<compile_context>
chip_gen: v6e
topology: v6e:2x2x1
jax: 0.10.0
libtpu: 0.0.40
codegen_flags: <defaults>
</compile_context>

<pallas_src>
import functools

import jax
import jax.numpy as jnp
from jax.experimental import pallas as pl
from jax.experimental.pallas import tpu as pltpu


def _linear_system_dy_kernel(at_ref, y_ref, dy_ref):
    # at_ref: (n, n)   A^T, pre-transposed in the wrapper (resident every step)
    # y_ref:  (TM, n)  tile of flattened state
    # dy_ref: (TM, n)  tile of output: dy[r] = A @ y[r]  ==  y[r] @ A^T
    dy_ref[...] = jnp.dot(
        y_ref[...], at_ref[...], preferred_element_type=jnp.float32
    ).astype(dy_ref.dtype)


@functools.partial(jax.jit, static_argnames=("block_rows",))
def linear_system_forward(A, t, y, *, block_rows=1024):
    """Pallas implementation of LinearSystem.forward(t, y).

    A: (n, n) float32
    t: (T, B) float32   (only its shape is used, matching the PyTorch module)
    y: (T, B, n) float32
    returns (dy, A_exp) with shapes (T, B, n) and (T, B, n, n).
    """
    T, B = t.shape
    n = A.shape[0]
    TB = T * B
    y_flat = y.reshape(TB, n)

    # Tile rows: large enough to amortize per-grid-step overhead and feed the
    # MXU a tall LHS, small enough that double-buffered (TM, n) blocks stay far
    # below scoped-VMEM limits on every generation (v7x included).
    if TB <= block_rows:
        TM = TB
        TB_pad = TB
    else:
        TM = block_rows
        TB_pad = pl.cdiv(TB, TM) * TM
        if TB_pad != TB:
            y_flat = jnp.pad(y_flat, ((0, TB_pad - TB), (0, 0)))

    grid = (TB_pad // TM,)

    # Pre-transpose A once in the wrapper (HBM), keeping the kernel free of
    # XLU transposes. (A is symmetric by construction, but stay general.)
    A_T = A.T

    cost = pl.CostEstimate(
        flops=2 * TB_pad * n * n,
        transcendentals=0,
        bytes_accessed=4 * (TB_pad * n * 2 + n * n),
    )

    dy_flat = pl.pallas_call(
        _linear_system_dy_kernel,
        out_shape=jax.ShapeDtypeStruct((TB_pad, n), y.dtype),
        grid=grid,
        in_specs=[
            pl.BlockSpec((n, n), lambda i: (0, 0)),
            pl.BlockSpec((TM, n), lambda i: (i, 0)),
        ],
        out_specs=pl.BlockSpec((TM, n), lambda i: (i, 0)),
        compiler_params=pltpu.CompilerParams(
            dimension_semantics=("parallel",)
        ),
        cost_estimate=cost,
    )(A_T, y_flat)

    dy = dy_flat[:TB].reshape(T, B, n)

    # A_exp is a pure broadcast of A with no data dependence on y; returning it
    # unmaterialized from the wrapper lets XLA fuse it into the consumer
    # instead of writing TB redundant copies of A to HBM inside the kernel.
    A_exp = jnp.broadcast_to(A[None, None], (T, B, n, n))

    return dy, A_exp


def make_linear_system_A(key, n):
    """Deterministic init mirroring LinearSystem.__init__: A = Ap.T * Ap (elementwise)."""
    Ap = jax.random.uniform(key, (n, n), dtype=jnp.float32)
    return Ap.T * Ap


if __name__ == "__main__":
    n = 32   # system size
    T = 2    # time steps
    B = 4    # batch

    key = jax.random.PRNGKey(0)
    k_a, k_t, k_y = jax.random.split(key, 3)

    A = make_linear_system_A(k_a, n)
    t = jax.random.uniform(k_t, (T, B), dtype=jnp.float32)
    y = jax.random.normal(k_y, (T, B, n), dtype=jnp.float32)

    dy, A_exp = linear_system_forward(A, t, y)
    jax.block_until_ready((dy, A_exp))

    # Reference check (plain JAX)
    dy_ref = jnp.einsum("ij,tbj->tbi", A, y)
    aexp_ref = jnp.broadcast_to(A[None, None], (T, B, n, n))
    assert dy.shape == (T, B, n) and A_exp.shape == (T, B, n, n)
    assert jnp.allclose(dy, dy_ref, atol=1e-5, rtol=1e-5)
    assert jnp.allclose(A_exp, aexp_ref)

    print("KERNEL_OK")
</pallas_src>

<mosaic_0001>
module attributes {stable_mosaic.version = 11 : i64} {
  func.func @_linear_system_dy_kernel(%arg0: i32, %arg1: memref<32x32xf32, #tpu.memory_space<vmem>>, %arg2: memref<8x32xf32, #tpu.memory_space<vmem>>, %arg3: memref<8x32xf32, #tpu.memory_space<vmem>>) attributes {dimension_semantics = [#tpu.dimension_semantics<parallel>], iteration_bounds = array<i64: 1>, scalar_prefetch = 0 : i64, scratch_operands = 0 : i64, tpu.core_type = #tpu.core_type<tc>, window_params = [{pipeline_mode = #tpu.pipeline_mode<synchronous>, transform_indices = @transform_0, window_bounds = array<i64: 32, 32>}, {transform_indices = @transform_1, window_bounds = array<i64: 8, 32>}, {transform_indices = @transform_2, window_bounds = array<i64: 8, 32>}]} {
    %c0 = arith.constant 0 : index
    %c0_0 = arith.constant 0 : index
    %0 = vector.load %arg2[%c0, %c0_0] : memref<8x32xf32, #tpu.memory_space<vmem>>, vector<8x32xf32>
    %c0_1 = arith.constant 0 : index
    %c0_2 = arith.constant 0 : index
    %1 = vector.load %arg1[%c0_1, %c0_2] : memref<32x32xf32, #tpu.memory_space<vmem>>, vector<32x32xf32>
    %cst = arith.constant dense<0.000000e+00> : vector<8x32xf32>
    %2 = tpu.matmul %0, %1, %cst {dimension_numbers = #tpu.dot_dimension_numbers<[1], [0], [0], [1], [0, 0, 1, 1], [], []>} : vector<8x32xf32>, vector<32x32xf32>, vector<8x32xf32> -> vector<8x32xf32>
    %c0_3 = arith.constant 0 : index
    %c0_4 = arith.constant 0 : index
    %3 = vector.load %arg3[%c0_3, %c0_4] : memref<8x32xf32, #tpu.memory_space<vmem>>, vector<8x32xf32>
    tpu.vector_store %arg3[%c0_3, %c0_4], %2 {strides = array<i32>} : memref<8x32xf32, #tpu.memory_space<vmem>>, vector<8x32xf32>,
    return
  }
  func.func @transform_0(%arg0: i32) -> (i32, i32) {
    %c0_i32 = arith.constant 0 : i32
    %c0_i32_0 = arith.constant 0 : i32
    %c0_i32_1 = arith.constant 0 : i32
    return %c0_i32, %c0_i32_0 : i32, i32
  }
  func.func @transform_1(%arg0: i32) -> (i32, i32) {
    %c0_i32 = arith.constant 0 : i32
    %c0_i32_0 = arith.constant 0 : i32
    return %arg0, %c0_i32 : i32, i32
  }
  func.func @transform_2(%arg0: i32) -> (i32, i32) {
    %c0_i32 = arith.constant 0 : i32
    %c0_i32_0 = arith.constant 0 : i32
    return %arg0, %c0_i32 : i32, i32
  }
}

</mosaic_0001>

<llo_original>
// kernel: linear_system_forward.1
$region0: #{linear_system_forward.1}
  #allocation0 [shape = 'u32[]', space=smem, size = 0x4, offset = 0x4, fixed_abs, tag = 'smem constant byte address 0x4 - core index']
  #allocation1 [shape = 'u32[144,128]{1,0:T(1,128)}', space=vmem, size = 0x12000, scoped, tag = 'internal scratch']
  %s0 = inlined_call_operand.vmem [shape: f32[32,32], index: 0, kind: input, shape index: {}]
  %s1 = inlined_call_operand.vmem [shape: f32[8,32], index: 1, kind: input, shape index: {}]
  %s2 = inlined_call_operand.hbm [shape: f32[8,32], index: 2, kind: output, shape index: {}]
  %s3 = sld [smem:[#allocation0]]
  $region18: #{linear_system_forward.1} parent=0
    _
  %s5 = ssub.s32 1, %s3
  %s6 = scalar_select 0, %s5, %s3
  $region1: #{linear_system_forward.1} parent=0
    #allocation2 [shape = 'u8[4096]{0}', space=vmem, size = 0x1000, scoped, tag = 'output window, operand 0, single buffered']
    #allocation3 [shape = 's32[1]{0}', space=sflag, size = 0x4, scoped, tag = 'scoped memory for linear_system_forward.1']
    %7 = vsyncpa [#allocation3], 0
    // Predicated region
    $region2: #{linear_system_forward.1} parent=1 // pred_check
      _
    $region3: #{linear_system_forward.1} parent=1 // pred_check_branch
      %9 = sbr.rel (0) target = $region5
    $region4: #{linear_system_forward.1} parent=1 // pred_region
      _
    $region5: #{linear_system_forward.1} parent=1 // pred_fallthru
      _
    // Predicated region
    $region6: #{linear_system_forward.1} parent=1 // pred_check
      _
    $region7: #{linear_system_forward.1} parent=1 // pred_check_branch
      %11 = sbr.rel (0) target = $region9
    $region8: #{linear_system_forward.1} parent=1 // pred_region
      _
    $region9: #{linear_system_forward.1} parent=1 // pred_fallthru
      _
    %v12 = vld [vmem:[%s1] sm:$0xff]
    %v13 = vld [vmem:[%s0] sm:$0xff]
    %v14 = vld [vmem:[%s0 + $0x8] sm:$0xff]
    %v15 = vld [vmem:[%s0 + $0x10] sm:$0xff]
    %v16 = vld [vmem:[%s0 + $0x18] sm:$0xff]
    %vm17 = vcmask 261120
    %v19 = vsel %vm17, %v12, 0
    %21 = vmatprep.subr.mxu0 0.0
    %22 = vmatpush1.msra.mxu0 0.0
    %23 = vmatprep.subr.mxu0 0.0
    %24 = vmatpush1.msra.mxu0 0.0
    %25 = vmatprep.subr.mxu0 0.0
    %26 = vmatpush1.msra.mxu0 0.0
    %27 = vmatprep.subr.mxu0 0.0
    %28 = vmatpush1.msra.mxu0 0.0
    %29 = vmatprep.subr.mxu0 0.0
    %30 = vmatpush1.msra.mxu0 0.0
    %31 = vmatprep.subr.mxu0 0.0
    %32 = vmatpush1.msra.mxu0 0.0
    %33 = vmatprep.subr.mxu0 0.0
    %34 = vmatpush1.msra.mxu0 0.0
    %35 = vmatprep.subr.mxu0 0.0
    %36 = vmatpush1.msra.mxu0 0.0
    %37 = vmatprep.subr.mxu0 0.0
    %38 = vmatpush1.msra.mxu0 0.0
    %39 = vmatprep.subr.mxu0 0.0
    %40 = vmatpush1.msra.mxu0 0.0
    %41 = vmatprep.subr.mxu0 0.0
    %42 = vmatpush1.msra.mxu0 0.0
    %43 = vmatprep.subr.mxu0 0.0
    %44 = vmatpush1.msra.mxu0 0.0
    %45 = vmatprep.subr.mxu0 0.0
    %46 = vmatpush1.msra.mxu0 %v16
    %47 = vmatprep.subr.mxu0 0.0
    %48 = vmatpush1.msra.mxu0 %v15
    %49 = vmatprep.subr.mxu0 0.0
    %50 = vmatpush1.msra.mxu0 %v14
    %51 = vmatprep.subr.mxu0 0.0
    %52 = vmatpush1.msra.mxu0 %v13
    %53 = vmatprep.subr.mxu0 0.0
    %54 = vmatpush2.msra.mxu0 0.0
    %55 = vmatprep.subr.mxu0 0.0
    %56 = vmatpush2.msra.mxu0 0.0
    %57 = vmatprep.subr.mxu0 0.0
    %58 = vmatpush2.msra.mxu0 0.0
    %59 = vmatprep.subr.mxu0 0.0
    %60 = vmatpush2.msra.mxu0 0.0
    %61 = vmatprep.subr.mxu0 0.0
    %62 = vmatpush2.msra.mxu0 0.0
    %63 = vmatprep.subr.mxu0 0.0
    %64 = vmatpush2.msra.mxu0 0.0
    %65 = vmatprep.subr.mxu0 0.0
    %66 = vmatpush2.msra.mxu0 0.0
    %67 = vmatprep.subr.mxu0 0.0
    %68 = vmatpush2.msra.mxu0 0.0
    %69 = vmatprep.subr.mxu0 0.0
    %70 = vmatpush2.msra.mxu0 0.0
    %71 = vmatprep.subr.mxu0 0.0
    %72 = vmatpush2.msra.mxu0 0.0
    %73 = vmatprep.subr.mxu0 0.0
    %74 = vmatpush2.msra.mxu0 0.0
    %75 = vmatprep.subr.mxu0 0.0
    %76 = vmatpush2.msra.mxu0 0.0
    %77 = vmatprep.subr.mxu0 0.0
    %78 = vmatpush2.msra.mxu0 0.0
    %79 = vmatprep.subr.mxu0 0.0
    %80 = vmatpush2.msra.mxu0 0.0
    %81 = vmatprep.subr.mxu0 0.0
    %82 = vmatpush2.msra.mxu0 0.0
    %83 = vmatprep.subr.mxu0 0.0
    %84 = vmatpush2.msra.mxu0 0.0
    %85 = vmatprep.mubr.f32.mxu0 0.0
    %86 = vmatmul.mubr.f32.gmra.mxu0 %v19
    %v87 = vpop.f32.mrf.mxu0
    %v88 = vadd.f32 0.0, %v87
    %v89 = vpop.f32.mrf.mxu0
    %90 = vdwg.mxu0
    %91 = vst.msk [vmem:[#allocation2] sm:$0xff] %vm17, %v88
    // Predicated region
    $region10: #{linear_system_forward.1} parent=1 // pred_check
      _
    $region11: #{linear_system_forward.1} parent=1 // pred_check_branch
      %93 = sbr.rel (0) target = $region13
    $region12: #{linear_system_forward.1} parent=1 // pred_region
      %s95 = ssub.s32 128, 128
      %96 = vsyncadd [#allocation3], %s95
      %s98 = sshll.u32 [#allocation2], 4
      %s99 = int_to_ptr.vmem [resolvable:$true] %s98
      %101 = dma.vmem_to_hbm [thread:$0]  %s99, 128, %s2, [#allocation3]
    $region13: #{linear_system_forward.1} parent=1 // pred_fallthru
      _
    // Predicated region
    $region14: #{linear_system_forward.1} parent=1 // pred_check
      _
    $region15: #{linear_system_forward.1} parent=1 // pred_check_branch
      %103 = sbr.rel (0) target = $region17
    $region16: #{linear_system_forward.1} parent=1 // pred_region
      %104 = dma.done [#allocation3], 128
    $region17: #{linear_system_forward.1} parent=1 // pred_fallthru
      _
    %105 = vsyncpa [#allocation3], 1

</llo_original>
